<compile_context>
chip_gen: v7x
topology: tpu7x:2x2x1
jax: 0.10.0
libtpu: 0.0.40
codegen_flags: <defaults>
</compile_context>

<pallas_src>
import functools

import jax
import jax.numpy as jnp
from jax.experimental import pallas as pl
from jax.experimental.pallas import tpu as pltpu

_PNLL_EPS = 1e-8  # eps used internally by F.poisson_nll_loss(log_input=False)
_INPUT_BLOCK_BUDGET = 8 * 1024 * 1024   # 2 inputs x 2 pipeline buffers
_VMEM_LIMIT = 32 * 1024 * 1024          # safe on v5e/v6e (128 MiB) and v7x (64 MiB)


def _round_up(a, b):
    return ((a + b - 1) // b) * b


def _pred_and_log_pred(x, *, log_input, eps):
    if log_input:
        return jnp.exp(x), x            # log(exp(x)) == x : no per-element log
    pred = x + eps
    return pred, jnp.log(pred)


def _finalize(total_t, total_p, sum_ylogp, *, total_weight, seq_len, red_size):
    # poisson_nll_loss(total_p, total_t, log_input=False) / seq_len
    poisson = (total_p - total_t * jnp.log(total_p + _PNLL_EPS)) / seq_len
    # mean(-y * log(pred / total_p)) == (total_t*log(total_p) - sum(y*log(pred))) / red
    multinomial = (total_t * jnp.log(total_p) - sum_ylogp) / red_size
    return multinomial + total_weight * poisson


# ---------------------------------------------------------------------------
# multinomial_axis == "length": reduce over the last (lane) axis of (rows, L)
# ---------------------------------------------------------------------------
def _length_kernel(x_ref, y_ref, out_ref, sy_ref, sp_ref, syl_ref, *,
                   total_weight, eps, log_input, seq_len, red_size,
                   red_true, red_tile, mask_red):
    k = pl.program_id(1)

    @pl.when(k == 0)
    def _():
        sy_ref[...] = jnp.zeros_like(sy_ref)
        sp_ref[...] = jnp.zeros_like(sp_ref)
        syl_ref[...] = jnp.zeros_like(syl_ref)

    x = x_ref[...].astype(jnp.float32)
    y = y_ref[...].astype(jnp.float32)
    pred, log_pred = _pred_and_log_pred(x, log_input=log_input, eps=eps)
    prod = y * log_pred
    if mask_red:  # only traced when L was padded up to a multiple of red_tile
        col = jax.lax.broadcasted_iota(jnp.int32, x.shape, 1) + k * red_tile
        valid = col < red_true
        pred = jnp.where(valid, pred, 0.0)
        y = jnp.where(valid, y, 0.0)
        prod = jnp.where(valid, prod, 0.0)

    sy_ref[...] += jnp.sum(y, axis=-1, keepdims=True)
    sp_ref[...] += jnp.sum(pred, axis=-1, keepdims=True)
    syl_ref[...] += jnp.sum(prod, axis=-1, keepdims=True)

    @pl.when(k == pl.num_programs(1) - 1)
    def _():
        out_ref[...] = _finalize(
            sy_ref[...], sp_ref[...], syl_ref[...],
            total_weight=total_weight, seq_len=seq_len, red_size=red_size)


def _length_losses(x2, t2, *, total_weight, eps, log_input, seq_len):
    rows, red = x2.shape
    itemsize = max(x2.dtype.itemsize, t2.dtype.itemsize)

    # Reduction (lane) tile: full L if small, else a 128-multiple chunk.
    if red <= 1024:
        red_tile = red            # block dim == full array dim -> always legal
    else:
        red_tile = 512
    red_pad = _round_up(red, red_tile)

    # Row tile: keep 2 inputs x 2 pipeline buffers under the VMEM budget.
    tr = _INPUT_BLOCK_BUDGET // (4 * red_tile * itemsize)
    tr = max(8, min(512, (tr // 8) * 8))
    tr = min(tr, _round_up(rows, 8))
    rows_pad = _round_up(rows, tr)

    if rows_pad != rows or red_pad != red:
        pad = ((0, rows_pad - rows), (0, red_pad - red))
        x2 = jnp.pad(x2, pad)
        t2 = jnp.pad(t2, pad)

    grid = (rows_pad // tr, red_pad // red_tile)
    kernel = functools.partial(
        _length_kernel, total_weight=float(total_weight), eps=float(eps),
        log_input=bool(log_input), seq_len=float(seq_len),
        red_size=float(red), red_true=red, red_tile=red_tile,
        mask_red=(red_pad != red))

    out = pl.pallas_call(
        kernel,
        out_shape=jax.ShapeDtypeStruct((rows_pad, 1), jnp.float32),
        grid_spec=pltpu.PrefetchScalarGridSpec(
            num_scalar_prefetch=0,
            grid=grid,
            in_specs=[pl.BlockSpec((tr, red_tile), lambda i, k: (i, k)),
                      pl.BlockSpec((tr, red_tile), lambda i, k: (i, k))],
            out_specs=pl.BlockSpec((tr, 1), lambda i, k: (i, 0)),
            scratch_shapes=[pltpu.VMEM((tr, 1), jnp.float32)] * 3,
        ),
        compiler_params=pltpu.CompilerParams(
            dimension_semantics=("parallel", "arbitrary"),
            vmem_limit_bytes=_VMEM_LIMIT),
    )(x2, t2)
    return out[:rows]   # drop padded rows (they are finite garbage, unused)


# ---------------------------------------------------------------------------
# multinomial_axis == "task": keep (B, T, L) layout, reduce over sublane axis T
# ---------------------------------------------------------------------------
def _task_kernel(x_ref, y_ref, out_ref, *, total_weight, eps, log_input,
                 seq_len, red_size):
    x = x_ref[...].astype(jnp.float32)      # (T, TL)
    y = y_ref[...].astype(jnp.float32)
    pred, log_pred = _pred_and_log_pred(x, log_input=log_input, eps=eps)
    total_t = jnp.sum(y, axis=0, keepdims=True)           # (1, TL)
    total_p = jnp.sum(pred, axis=0, keepdims=True)
    sum_prod = jnp.sum(y * log_pred, axis=0, keepdims=True)
    out_ref[...] = _finalize(total_t, total_p, sum_prod,
                             total_weight=total_weight, seq_len=seq_len,
                             red_size=red_size)


def _task_losses(x3, t3, *, total_weight, eps, log_input):
    B, T, L = x3.shape
    itemsize = max(x3.dtype.itemsize, t3.dtype.itemsize)

    if L <= 1024:
        tl = L                     # block dim == full array dim -> legal
    else:
        tl = _INPUT_BLOCK_BUDGET // (4 * T * itemsize)
        tl = max(128, min(2048, (tl // 128) * 128))
        # TODO(synk): for extremely large task counts T, additionally tile the
        # task axis with running partial sums (as done for the 'length' path).
    l_pad = _round_up(L, tl)
    if l_pad != L:
        x3 = jnp.pad(x3, ((0, 0), (0, 0), (0, l_pad - L)))
        t3 = jnp.pad(t3, ((0, 0), (0, 0), (0, l_pad - L)))

    grid = (B, l_pad // tl)
    kernel = functools.partial(
        _task_kernel, total_weight=float(total_weight), eps=float(eps),
        log_input=bool(log_input), seq_len=float(L), red_size=float(T))

    out = pl.pallas_call(
        kernel,
        out_shape=jax.ShapeDtypeStruct((B, 1, l_pad), jnp.float32),
        grid_spec=pltpu.PrefetchScalarGridSpec(
            num_scalar_prefetch=0,
            grid=grid,
            in_specs=[pl.BlockSpec((None, T, tl), lambda b, l: (b, 0, l)),
                      pl.BlockSpec((None, T, tl), lambda b, l: (b, 0, l))],
            out_specs=pl.BlockSpec((None, 1, tl), lambda b, l: (b, 0, l)),
        ),
        compiler_params=pltpu.CompilerParams(
            dimension_semantics=("parallel", "parallel"),
            vmem_limit_bytes=_VMEM_LIMIT),
    )(x3, t3)
    return out[:, :, :L]   # drop padded positions


# ---------------------------------------------------------------------------
# public wrapper
# ---------------------------------------------------------------------------
def poisson_multinomial_loss(inputs, targets, *, total_weight=1.0, eps=1e-7,
                             log_input=True, reduction="mean",
                             multinomial_axis="length"):
    """JAX/Pallas equivalent of PoissonMultinomialLoss.forward."""
    assert inputs.shape == targets.shape and inputs.ndim == 3
    B, T, L = inputs.shape

    if multinomial_axis == "length":
        losses = _length_losses(
            inputs.reshape(B * T, L), targets.reshape(B * T, L),
            total_weight=total_weight, eps=eps, log_input=log_input,
            seq_len=L)
        losses = losses.reshape(B, T, 1)
    elif multinomial_axis == "task":
        losses = _task_losses(inputs, targets, total_weight=total_weight,
                              eps=eps, log_input=log_input)   # (B, 1, L)
    else:
        raise ValueError(multinomial_axis)

    if reduction == "mean":
        return jnp.mean(losses)
    elif reduction == "none":
        return losses
    else:
        raise ValueError(reduction)


# ---------------------------------------------------------------------------
# pure-JAX mirror of the PyTorch forward, for verification
# ---------------------------------------------------------------------------
def _reference(inputs, targets, *, total_weight=1.0, eps=1e-7,
               log_input=True, reduction="mean", multinomial_axis="length"):
    axis = 2 if multinomial_axis == "length" else 1
    seq_len = targets.shape[-1]
    x = inputs.astype(jnp.float32)
    y = targets.astype(jnp.float32)
    x = jnp.exp(x) if log_input else x + eps
    total_t = jnp.sum(y, axis=axis, keepdims=True)
    total_p = jnp.sum(x, axis=axis, keepdims=True)
    poisson = (total_p - total_t * jnp.log(total_p + _PNLL_EPS)) / seq_len
    log_p = jnp.log(x / total_p)
    multinomial = jnp.mean(-y * log_p, axis=axis, keepdims=True)
    loss = multinomial + total_weight * poisson
    return jnp.mean(loss) if reduction == "mean" else loss


if __name__ == "__main__":
    key = jax.random.PRNGKey(0)
    k1, k2, k3 = jax.random.split(key, 3)
    B, T, L = 2, 4, 16
    x = jax.random.normal(k1, (B, T, L), dtype=jnp.float32)       # log-counts
    t = jax.random.uniform(k2, (B, T, L), dtype=jnp.float32,
                           minval=0.0, maxval=5.0)                # counts
    counts = jax.random.uniform(k3, (B, T, L), dtype=jnp.float32,
                                minval=0.1, maxval=5.0)           # raw counts

    def check(got, want, what):
        got = jax.block_until_ready(got)
        want = jax.block_until_ready(want)
        assert got.shape == want.shape, (what, got.shape, want.shape)
        assert jnp.allclose(got, want, rtol=1e-4, atol=1e-4), (what, got, want)

    # default config: total_weight=1, eps=1e-7, log_input=True, mean, length
    check(poisson_multinomial_loss(x, t), _reference(x, t), "length/mean")
    check(poisson_multinomial_loss(x, t, reduction="none"),
          _reference(x, t, reduction="none"), "length/none")
    check(poisson_multinomial_loss(x, t, multinomial_axis="task"),
          _reference(x, t, multinomial_axis="task"), "task/mean")
    check(poisson_multinomial_loss(x, t, reduction="none",
                                   multinomial_axis="task"),
          _reference(x, t, reduction="none", multinomial_axis="task"),
          "task/none")
    # log_input=False path (inputs already represent predicted counts)
    check(poisson_multinomial_loss(counts, t, log_input=False),
          _reference(counts, t, log_input=False), "counts/mean")

    print("KERNEL_OK")
</pallas_src>

<mosaic_0001>
module attributes {stable_mosaic.version = 11 : i64} {
  func.func @_length_kernel(%arg0: i32, %arg1: i32, %arg2: memref<8x16xf32, #tpu.memory_space<vmem>>, %arg3: memref<8x16xf32, #tpu.memory_space<vmem>>, %arg4: memref<8x1xf32, #tpu.memory_space<vmem>>, %arg5: memref<8x1xf32, #tpu.memory_space<vmem>>, %arg6: memref<8x1xf32, #tpu.memory_space<vmem>>, %arg7: memref<8x1xf32, #tpu.memory_space<vmem>>) attributes {dimension_semantics = [#tpu.dimension_semantics<parallel>, #tpu.dimension_semantics<arbitrary>], iteration_bounds = array<i64: 1, 1>, scalar_prefetch = 0 : i64, scratch_operands = 3 : i64, tpu.core_type = #tpu.core_type<tc>, window_params = [{transform_indices = @transform_0, window_bounds = array<i64: 8, 16>}, {transform_indices = @transform_1, window_bounds = array<i64: 8, 16>}, {transform_indices = @transform_2, window_bounds = array<i64: 8, 1>}]} {
    %c0_i32 = arith.constant 0 : i32
    %0 = arith.cmpi eq, %arg1, %c0_i32 : i32
    %1 = arith.extui %0 : i1 to i32
    %c0_i32_0 = arith.constant 0 : i32
    %2 = arith.cmpi ne, %1, %c0_i32_0 : i32
    scf.if %2 {
      %cst_20 = arith.constant 0.000000e+00 : f32
      %25 = vector.broadcast %cst_20 : f32 to vector<8x1xf32>
      %c0_21 = arith.constant 0 : index
      %c0_22 = arith.constant 0 : index
      %26 = vector.load %arg5[%c0_21, %c0_22] : memref<8x1xf32, #tpu.memory_space<vmem>>, vector<8x1xf32>
      tpu.vector_store %arg5[%c0_21, %c0_22], %25 {strides = array<i32>} : memref<8x1xf32, #tpu.memory_space<vmem>>, vector<8x1xf32>,
      %cst_23 = arith.constant 0.000000e+00 : f32
      %27 = vector.broadcast %cst_23 : f32 to vector<8x1xf32>
      %c0_24 = arith.constant 0 : index
      %c0_25 = arith.constant 0 : index
      %28 = vector.load %arg6[%c0_24, %c0_25] : memref<8x1xf32, #tpu.memory_space<vmem>>, vector<8x1xf32>
      tpu.vector_store %arg6[%c0_24, %c0_25], %27 {strides = array<i32>} : memref<8x1xf32, #tpu.memory_space<vmem>>, vector<8x1xf32>,
      %cst_26 = arith.constant 0.000000e+00 : f32
      %29 = vector.broadcast %cst_26 : f32 to vector<8x1xf32>
      %c0_27 = arith.constant 0 : index
      %c0_28 = arith.constant 0 : index
      %30 = vector.load %arg7[%c0_27, %c0_28] : memref<8x1xf32, #tpu.memory_space<vmem>>, vector<8x1xf32>
      tpu.vector_store %arg7[%c0_27, %c0_28], %29 {strides = array<i32>} : memref<8x1xf32, #tpu.memory_space<vmem>>, vector<8x1xf32>,
    } else {
    }
    %c0 = arith.constant 0 : index
    %c0_1 = arith.constant 0 : index
    %3 = vector.load %arg2[%c0, %c0_1] : memref<8x16xf32, #tpu.memory_space<vmem>>, vector<8x16xf32>
    %c0_2 = arith.constant 0 : index
    %c0_3 = arith.constant 0 : index
    %4 = vector.load %arg3[%c0_2, %c0_3] : memref<8x16xf32, #tpu.memory_space<vmem>>, vector<8x16xf32>
    %5 = math.exp %3 : vector<8x16xf32>
    %6 = arith.mulf %4, %3 : vector<8x16xf32>
    %c0_4 = arith.constant 0 : index
    %c0_5 = arith.constant 0 : index
    %7 = vector.load %arg5[%c0_4, %c0_5] : memref<8x1xf32, #tpu.memory_space<vmem>>, vector<8x1xf32>
    %cst = arith.constant dense<0.000000e+00> : vector<8xf32>
    %8 = vector.multi_reduction <add>, %4, %cst [1] : vector<8x16xf32> to vector<8xf32>
    %9 = vector.shape_cast %8 : vector<8xf32> to vector<8x1xf32>
    %10 = arith.addf %7, %9 : vector<8x1xf32>
    %c0_6 = arith.constant 0 : index
    %c0_7 = arith.constant 0 : index
    %11 = vector.load %arg5[%c0_6, %c0_7] : memref<8x1xf32, #tpu.memory_space<vmem>>, vector<8x1xf32>
    tpu.vector_store %arg5[%c0_6, %c0_7], %10 {strides = array<i32>} : memref<8x1xf32, #tpu.memory_space<vmem>>, vector<8x1xf32>,
    %c0_8 = arith.constant 0 : index
    %c0_9 = arith.constant 0 : index
    %12 = vector.load %arg6[%c0_8, %c0_9] : memref<8x1xf32, #tpu.memory_space<vmem>>, vector<8x1xf32>
    %cst_10 = arith.constant dense<0.000000e+00> : vector<8xf32>
    %13 = vector.multi_reduction <add>, %5, %cst_10 [1] : vector<8x16xf32> to vector<8xf32>
    %14 = vector.shape_cast %13 : vector<8xf32> to vector<8x1xf32>
    %15 = arith.addf %12, %14 : vector<8x1xf32>
    %c0_11 = arith.constant 0 : index
    %c0_12 = arith.constant 0 : index
    %16 = vector.load %arg6[%c0_11, %c0_12] : memref<8x1xf32, #tpu.memory_space<vmem>>, vector<8x1xf32>
    tpu.vector_store %arg6[%c0_11, %c0_12], %15 {strides = array<i32>} : memref<8x1xf32, #tpu.memory_space<vmem>>, vector<8x1xf32>,
    %c0_13 = arith.constant 0 : index
    %c0_14 = arith.constant 0 : index
    %17 = vector.load %arg7[%c0_13, %c0_14] : memref<8x1xf32, #tpu.memory_space<vmem>>, vector<8x1xf32>
    %cst_15 = arith.constant dense<0.000000e+00> : vector<8xf32>
    %18 = vector.multi_reduction <add>, %6, %cst_15 [1] : vector<8x16xf32> to vector<8xf32>
    %19 = vector.shape_cast %18 : vector<8xf32> to vector<8x1xf32>
    %20 = arith.addf %17, %19 : vector<8x1xf32>
    %c0_16 = arith.constant 0 : index
    %c0_17 = arith.constant 0 : index
    %21 = vector.load %arg7[%c0_16, %c0_17] : memref<8x1xf32, #tpu.memory_space<vmem>>, vector<8x1xf32>
    tpu.vector_store %arg7[%c0_16, %c0_17], %20 {strides = array<i32>} : memref<8x1xf32, #tpu.memory_space<vmem>>, vector<8x1xf32>,
    %c0_i32_18 = arith.constant 0 : i32
    %22 = arith.cmpi eq, %arg1, %c0_i32_18 : i32
    %23 = arith.extui %22 : i1 to i32
    %c0_i32_19 = arith.constant 0 : i32
    %24 = arith.cmpi ne, %23, %c0_i32_19 : i32
    scf.if %24 {
      %c0_20 = arith.constant 0 : index
      %c0_21 = arith.constant 0 : index
      %25 = vector.load %arg5[%c0_20, %c0_21] : memref<8x1xf32, #tpu.memory_space<vmem>>, vector<8x1xf32>
      %c0_22 = arith.constant 0 : index
      %c0_23 = arith.constant 0 : index
      %26 = vector.load %arg6[%c0_22, %c0_23] : memref<8x1xf32, #tpu.memory_space<vmem>>, vector<8x1xf32>
      %c0_24 = arith.constant 0 : index
      %c0_25 = arith.constant 0 : index
      %27 = vector.load %arg7[%c0_24, %c0_25] : memref<8x1xf32, #tpu.memory_space<vmem>>, vector<8x1xf32>
      %cst_26 = arith.constant 9.99999993E-9 : f32
      %28 = vector.broadcast %cst_26 : f32 to vector<8x1xf32>
      %29 = arith.addf %26, %28 : vector<8x1xf32>
      %30 = math.log %29 : vector<8x1xf32>
      %31 = arith.mulf %25, %30 : vector<8x1xf32>
      %32 = arith.subf %26, %31 : vector<8x1xf32>
      %cst_27 = arith.constant 1.600000e+01 : f32
      %33 = vector.broadcast %cst_27 : f32 to vector<8x1xf32>
      %34 = arith.divf %32, %33 : vector<8x1xf32>
      %35 = math.log %26 : vector<8x1xf32>
      %36 = arith.mulf %25, %35 : vector<8x1xf32>
      %37 = arith.subf %36, %27 : vector<8x1xf32>
      %cst_28 = arith.constant 1.600000e+01 : f32
      %38 = vector.broadcast %cst_28 : f32 to vector<8x1xf32>
      %39 = arith.divf %37, %38 : vector<8x1xf32>
      %cst_29 = arith.constant 1.000000e+00 : f32
      %40 = vector.broadcast %cst_29 : f32 to vector<8x1xf32>
      %41 = arith.mulf %40, %34 : vector<8x1xf32>
      %42 = arith.addf %39, %41 : vector<8x1xf32>
      %c0_30 = arith.constant 0 : index
      %c0_31 = arith.constant 0 : index
      %43 = vector.load %arg4[%c0_30, %c0_31] : memref<8x1xf32, #tpu.memory_space<vmem>>, vector<8x1xf32>
      tpu.vector_store %arg4[%c0_30, %c0_31], %42 {strides = array<i32>} : memref<8x1xf32, #tpu.memory_space<vmem>>, vector<8x1xf32>,
    } else {
    }
    return
  }
  func.func @transform_0(%arg0: i32, %arg1: i32) -> (i32, i32) {
    %c0_i32 = arith.constant 0 : i32
    return %arg0, %arg1 : i32, i32
  }
  func.func @transform_1(%arg0: i32, %arg1: i32) -> (i32, i32) {
    %c0_i32 = arith.constant 0 : i32
    return %arg0, %arg1 : i32, i32
  }
  func.func @transform_2(%arg0: i32, %arg1: i32) -> (i32, i32) {
    %c0_i32 = arith.constant 0 : i32
    %c0_i32_0 = arith.constant 0 : i32
    return %arg0, %c0_i32 : i32, i32
  }
}

</mosaic_0001>

<llo_original>
// kernel: tpu_custom_call.1
$region0: #{tpu_custom_call.1}
  #allocation0 [shape = 'u32[]', space=smem, size = 0x4, offset = 0x4, fixed_abs, tag = 'smem constant byte address 0x4 - core index']
  #allocation1 [shape = 'u32[144,128]{1,0:T(1,128)}', space=vmem, size = 0x12000, scoped, tag = 'internal scratch']
  #allocation2 [shape = 'f32[8,1]{1,0:T(8,128)}', space=vmem, size = 0x1000, scoped, tag = 'scratch operand']
  #allocation3 [shape = 'f32[8,1]{1,0:T(8,128)}', space=vmem, size = 0x1000, scoped, tag = 'scratch operand']
  #allocation4 [shape = 'f32[8,1]{1,0:T(8,128)}', space=vmem, size = 0x1000, scoped, tag = 'scratch operand']
  %s0 = inlined_call_operand.hbm [shape: f32[8,16], index: 0, kind: input, shape index: {}]
  %s1 = inlined_call_operand.hbm [shape: f32[8,16], index: 1, kind: input, shape index: {}]
  %s2 = inlined_call_operand.vmem [shape: f32[8,1], index: 2, kind: output, shape index: {}]
  %s3 = sld [smem:[#allocation0]]
  $region34: #{tpu_custom_call.1} parent=0
    _
  %s5 = ssub.s32 1, %s3
  %s6 = scalar_select 0, %s5, %s3
  $region1: #{tpu_custom_call.1} parent=0
    #allocation5 [shape = 'u8[4096]{0}', space=vmem, size = 0x1000, scoped, tag = 'input window, operand 0, single buffered']
    #allocation6 [shape = 's32[1]{0}', space=sflag, size = 0x4, scoped, tag = 'scoped memory for tpu_custom_call.1']
    #allocation7 [shape = 'u8[4096]{0}', space=vmem, size = 0x1000, scoped, tag = 'input window, operand 1, single buffered']
    #allocation8 [shape = 's32[1]{0}', space=sflag, size = 0x4, scoped, tag = 'scoped memory for tpu_custom_call.1']
    %7 = vsyncpa [#allocation6], 0
    %8 = vsyncpa [#allocation8], 0
    // Predicated region
    $region2: #{tpu_custom_call.1} parent=1 // pred_check
      _
    $region3: #{tpu_custom_call.1} parent=1 // pred_check_branch
      %10 = sbr.rel (0) target = $region5
    $region4: #{tpu_custom_call.1} parent=1 // pred_region
      %s12 = ssub.s32 128, 128
      %13 = vsyncadd [#allocation6], %s12
      %s15 = sshll.u32 [#allocation5], 4
      %s16 = int_to_ptr.vmem [resolvable:$true] %s15
      %18 = dma.hbm_to_vmem [thread:$0]  %s0, 128, %s16, [#allocation6]
    $region5: #{tpu_custom_call.1} parent=1 // pred_fallthru
      _
    // Predicated region
    $region6: #{tpu_custom_call.1} parent=1 // pred_check
      _
    $region7: #{tpu_custom_call.1} parent=1 // pred_check_branch
      %20 = sbr.rel (0) target = $region9
    $region8: #{tpu_custom_call.1} parent=1 // pred_region
      %s22 = ssub.s32 128, 128
      %23 = vsyncadd [#allocation8], %s22
      %s25 = sshll.u32 [#allocation7], 4
      %s26 = int_to_ptr.vmem [resolvable:$true] %s25
      %28 = dma.hbm_to_vmem [thread:$0]  %s1, 128, %s26, [#allocation8]
    $region9: #{tpu_custom_call.1} parent=1 // pred_fallthru
      _
    // Predicated region
    $region10: #{tpu_custom_call.1} parent=1 // pred_check
      _
    $region11: #{tpu_custom_call.1} parent=1 // pred_check_branch
      %30 = sbr.rel (0) target = $region13
    $region12: #{tpu_custom_call.1} parent=1 // pred_region
      %31 = dma.done [#allocation6], 128
    $region13: #{tpu_custom_call.1} parent=1 // pred_fallthru
      _
    // Predicated region
    $region14: #{tpu_custom_call.1} parent=1 // pred_check
      _
    $region15: #{tpu_custom_call.1} parent=1 // pred_check_branch
      %33 = sbr.rel (0) target = $region17
    $region16: #{tpu_custom_call.1} parent=1 // pred_region
      %34 = dma.done [#allocation8], 128
    $region17: #{tpu_custom_call.1} parent=1 // pred_fallthru
      _
    %p35 = scmp.eq.s32.totalorder 0, 0
    // Predicated region
    $region18: #{tpu_custom_call.1} parent=1 // pred_check
      %p36 = pneg %p35
    $region19: #{tpu_custom_call.1} parent=1 // pred_check_branch
      %38 = sbr.rel (%p36) target = $region21
    $region20: #{tpu_custom_call.1} parent=1 // pred_region
      %vm39 = vcmask 7168
      %40 = vst.msk [vmem:[#allocation2] sm:$0xff] %vm39, 0.0
      %41 = vst.msk [vmem:[#allocation3] sm:$0xff] %vm39, 0.0
      %42 = vst.msk [vmem:[#allocation4] sm:$0xff] %vm39, 0.0
    $region21: #{tpu_custom_call.1} parent=1 // pred_fallthru
      _
    %v43 = vld [vmem:[#allocation5] sm:$0xff]
    %v44 = vld [vmem:[#allocation7] sm:$0xff]
    %v45 = vmul.f32 %v43, 1.442695
    %v46 = vpow.pop %v45
    %v47 = vmul.f32 %v44, %v43
    %v48 = vld [vmem:[#allocation2] sm:$0xff]
    %vm49 = vcmask 130048
    %v50 = vsel %vm49, %v44, 0.0
    %51 = vadd.xlane.f32.xlu0 %v50
    %v52 = vpop.xlane.xlu0 %51
    %v53 = vadd.f32 %v48, %v52
    %vm54 = vcmask 7168
    %55 = vst.msk [vmem:[#allocation2] sm:$0xff] %vm54, %v53
    %v56 = vld [vmem:[#allocation3] sm:$0xff]
    %v57 = vsel %vm49, %v46, 0.0
    %58 = vadd.xlane.f32.xlu0 %v57
    %v59 = vpop.xlane.xlu0 %58
    %v60 = vadd.f32 %v56, %v59
    %61 = vst.msk [vmem:[#allocation3] sm:$0xff] %vm54, %v60
    %v62 = vld [vmem:[#allocation4] sm:$0xff]
    %v63 = vsel %vm49, %v47, 0.0
    %64 = vadd.xlane.f32.xlu0 %v63
    %v65 = vpop.xlane.xlu0 %64
    %v66 = vadd.f32 %v62, %v65
    %67 = vst.msk [vmem:[#allocation4] sm:$0xff] %vm54, %v66
    // Predicated region
    $region22: #{tpu_custom_call.1} parent=1 // pred_check
      %p68 = pneg %p35
    $region23: #{tpu_custom_call.1} parent=1 // pred_check_branch
      %70 = sbr.rel (%p68) target = $region25
    $region24: #{tpu_custom_call.1} parent=1 // pred_region
      %v71 = vld [vmem:[#allocation2] sm:$0xff]
      %v72 = vld [vmem:[#allocation3] sm:$0xff]
      %v73 = vld [vmem:[#allocation4] sm:$0xff]
      %v74 = vadd.f32 %v72, 1e-08
      %v75 = vlog2.pop %v74
      %v76 = vmul.f32 %v75, 0.6931472
      %v77 = vmul.f32 %v71, %v76
      %v78 = vsub.f32 %v72, %v77
      %v79 = vrcp.pop 16.0
      %v80 = vmul.f32 %v78, %v79
      %v81 = vlog2.pop %v72
      %v82 = vmul.f32 %v81, 0.6931472
      %v83 = vmul.f32 %v71, %v82
      %v84 = vsub.f32 %v83, %v73
      %v85 = vmul.f32 %v84, %v79
      %v86 = vadd.f32 %v85, %v80
      %87 = vst.msk [vmem:[%s2] sm:$0xff] %vm54, %v86
    $region25: #{tpu_custom_call.1} parent=1 // pred_fallthru
      _
    // Predicated region
    $region26: #{tpu_custom_call.1} parent=1 // pred_check
      _
    $region27: #{tpu_custom_call.1} parent=1 // pred_check_branch
      %89 = sbr.rel (0) target = $region29
    $region28: #{tpu_custom_call.1} parent=1 // pred_region
      _
    $region29: #{tpu_custom_call.1} parent=1 // pred_fallthru
      _
    // Predicated region
    $region30: #{tpu_custom_call.1} parent=1 // pred_check
      _
    $region31: #{tpu_custom_call.1} parent=1 // pred_check_branch
      %91 = sbr.rel (0) target = $region33
    $region32: #{tpu_custom_call.1} parent=1 // pred_region
      _
    $region33: #{tpu_custom_call.1} parent=1 // pred_fallthru
      _
    %92 = vsyncpa [#allocation6], 1
    %93 = vsyncpa [#allocation8], 1

</llo_original>
